<compile_context>
chip_gen: v6e
topology: v6e:2x2x1
jax: 0.10.0
libtpu: 0.0.40
codegen_flags: <defaults>
</compile_context>

<pallas_src>
import functools
import math

import jax
import jax.numpy as jnp
from jax import lax
from jax.experimental import pallas as pl
from jax.experimental.pallas import tpu as pltpu


# ----------------------------------------------------------------------------
# Kernel: one grid step = `time_chunk` recurrent steps for one batch block.
# ----------------------------------------------------------------------------
def _ptf_chunk_kernel(s0_ref, keep_ref, drive_ref, A_ref, sout_ref, state_scr,
                      *, time_chunk, n_hid, matmul_dtype):
    """
    s0_ref    : (bb, n_hid)        f32   effective initial state (s0 + ext0 @ B)
    keep_ref  : (bb, Tc*n_hid)     bf16  PTF keep mask, lane-padded (0 beyond n_obs)
    drive_ref : (bb, Tc*n_hid)     f32   (keep*tanh(obs)) @ A[:n_obs] + ext_{t+1} @ B
    A_ref     : (n_hid, n_hid)     matmul_dtype
    sout_ref  : (bb, Tc*n_hid)     f32   s_t for every step of the chunk (lane-dense)
    state_scr : (bb, n_hid)        f32   VMEM scratch persisting across chunks
    """
    @pl.when(pl.program_id(1) == 0)     # first chunk of this batch block
    def _():
        state_scr[...] = s0_ref[...]

    A = A_ref[...]            # loop-invariant; lives in vregs for the whole chunk
    # TODO(synk): hold A in the MXU weight staging registers across the chunk
    #             (pltpu.matmul_push_rhs / matmul_acc_lhs / matmul_pop) — the
    #             canonical held-RHS case — once the exact staging API is pinned.

    state = state_scr[...]
    # Static unroll: time_chunk is kept small (<= 16).  For bigger chunks switch
    # to lax.fori_loop(..., unroll=4..8) with pl.ds indexing to avoid spills.
    for j in range(time_chunk):
        lo = j * n_hid
        sout_ref[:, lo:lo + n_hid] = state            # emit pre-transition s_t
        keep_j = keep_ref[:, lo:lo + n_hid]
        drive_j = drive_ref[:, lo:lo + n_hid]
        # Teacher-forced lanes (keep == 1) were folded into `drive` in the
        # wrapper:  tanh(s - keep*(s-obs)) == keep*tanh(obs) + (1-keep)*tanh(s).
        free = jnp.where(keep_j != 0, 0.0, jnp.tanh(state))
        state = jnp.dot(free.astype(matmul_dtype), A,
                        preferred_element_type=jnp.float32) + drive_j
    state_scr[...] = state


# ----------------------------------------------------------------------------
# Wrapper: batched forward path of PTF_ModelClimate.
# ----------------------------------------------------------------------------
def ptf_model_climate_forward(initial_state, data_window, prob, A_w, B_w,
                              n_obs, n_ext, dropout_key,
                              time_chunk=8, matmul_dtype=jnp.bfloat16,
                              batch_block=None):
    """
    initial_state: (B, 1, n_hid) float32
    data_window  : (B, seq, 1, n_obs + n_ext) float32
    returns Xions (B, seq, 1, n_obs), out_clust (B, seq, 1, n_obs),
            s_states (B, seq, 1, n_hid)
    """
    f32 = jnp.float32
    hp = lax.Precision.HIGHEST
    Bsz, seq = data_window.shape[0], data_window.shape[1]
    n_hid = A_w.shape[0]

    # ---- batch-major glue (no transposes) ---------------------------------
    obs = data_window[:, :, 0, :n_obs].astype(f32)        # (B, seq, n_obs)
    ext = data_window[:, :, 0, n_obs:].astype(f32)        # (B, seq, n_ext)
    A_f32 = A_w.astype(f32)
    B_f32 = B_w.astype(f32)

    # Hoisted external projection: one well-shaped matmul for all steps.
    u_all = jnp.einsum('bte,eh->bth', ext, B_f32, precision=hp)   # (B, seq, n_hid)
    s0_eff = initial_state.reshape(Bsz, n_hid).astype(f32) + u_all[:, 0]

    # PTF keep mask (data-independent of the recurrence).
    # TODO(synk): no 1/(1-prob) dropout rescale is applied (and the obs-fold
    #             below requires an exact {0,1} mask).
    keep = (jax.random.uniform(dropout_key, (Bsz, seq, n_obs), f32) >= prob
            ).astype(f32)

    # Algebraic fold of the teacher-forcing term into the drive stream:
    #   s_{t+1} = [(1-keep)*tanh(s_t)] @ A + drive_t
    #   drive_t = (keep_t * tanh(obs_t)) @ A[:n_obs] + ext_{t+1} @ B
    forced = keep * jnp.tanh(obs)                                       # (B,seq,n_obs)
    corr = jnp.einsum('bto,oh->bth', forced, A_f32[:n_obs, :], precision=hp)
    u_next = jnp.concatenate([u_all[:, 1:], jnp.zeros_like(u_all[:, :1])], axis=1)
    drive = corr + u_next                                               # (B,seq,n_hid)

    # Lane-pad the keep mask to n_hid (zeros beyond n_obs => free-running lanes);
    # stream it in bf16 (exact for 0/1) to halve its HBM bytes.
    keep_pad = jnp.pad(keep, ((0, 0), (0, 0), (0, n_hid - n_obs))
                       ).astype(jnp.bfloat16)

    # ---- chunk the time axis (lane-dense blocks need Tc*n_hid % 128 == 0) --
    Tc = max(1, min(seq, int(time_chunk)))
    if (Tc * n_hid) % 128 != 0:
        step = 128 // math.gcd(128, n_hid)
        Tc = -(-Tc // step) * step
    n_chunks = -(-seq // Tc)
    seq_pad = n_chunks * Tc

    # ---- pad the batch dim to full sublane tiles ---------------------------
    b_align = 16 if jnp.dtype(matmul_dtype).itemsize == 2 else 8
    B_pad = -(-Bsz // b_align) * b_align

    def _pad3(x):
        return jnp.pad(x, ((0, B_pad - Bsz), (0, seq_pad - seq), (0, 0)))

    keep_p = _pad3(keep_pad)
    drive_p = _pad3(drive)
    s0_p = jnp.pad(s0_eff, ((0, B_pad - Bsz), (0, 0)))

    # Lane-dense flattening (free, contiguous reshape): (B, seq, n_hid) -> (B, seq*n_hid)
    keep_flat = keep_p.reshape(B_pad, seq_pad * n_hid)
    drive_flat = drive_p.reshape(B_pad, seq_pad * n_hid)

    # ---- grid: (batch blocks, time chunks) ---------------------------------
    bb = B_pad if (batch_block is None or B_pad % batch_block != 0) else int(batch_block)
    n_bb = B_pad // bb                       # >1 + "parallel" uses v7x's 2nd TC
    lane = Tc * n_hid

    grid_spec = pltpu.PrefetchScalarGridSpec(
        num_scalar_prefetch=0,
        grid=(n_bb, n_chunks),
        in_specs=[
            pl.BlockSpec((bb, n_hid), lambda b, c: (b, 0)),        # s0_eff
            pl.BlockSpec((bb, lane), lambda b, c: (b, c)),         # keep (bf16)
            pl.BlockSpec((bb, lane), lambda b, c: (b, c)),         # drive (f32)
            pl.BlockSpec((n_hid, n_hid), lambda b, c: (0, 0)),     # A
        ],
        out_specs=pl.BlockSpec((bb, lane), lambda b, c: (b, c)),   # s_states
        scratch_shapes=[pltpu.VMEM((bb, n_hid), f32)],
    )

    # VMEM budget: double-buffered streams + A + scratch, capped for v7x's
    # 64 MiB VMEM (raise toward ~96 MiB on v6e if time_chunk is grown).
    a_bytes = jnp.dtype(matmul_dtype).itemsize
    vmem_est = (2 * (bb * lane * 2 + bb * lane * 4 + bb * lane * 4)
                + 2 * bb * n_hid * 4
                + 2 * n_hid * n_hid * a_bytes
                + bb * n_hid * 4)
    vmem_limit = int(min(max(4 * vmem_est, 16 * 1024 * 1024), 48 * 1024 * 1024))

    s_flat = pl.pallas_call(
        functools.partial(_ptf_chunk_kernel, time_chunk=Tc, n_hid=n_hid,
                          matmul_dtype=matmul_dtype),
        out_shape=jax.ShapeDtypeStruct((B_pad, seq_pad * n_hid), f32),
        grid_spec=grid_spec,
        compiler_params=pltpu.CompilerParams(
            dimension_semantics=("parallel", "arbitrary"),
            vmem_limit_bytes=vmem_limit),
    )(s0_p, keep_flat, drive_flat, A_w.astype(matmul_dtype))

    # ---- derived outputs (exact functions of s_states, obs, keep) ----------
    s_states_bm = s_flat.reshape(B_pad, seq_pad, n_hid)[:Bsz, :seq]  # (B,seq,n_hid)
    xion = s_states_bm[..., :n_obs]                                  # identity read-out
    out_clust = keep * (xion - obs)                                  # PTF residual

    Xions = xion[:, :, None, :]
    out_clust = out_clust[:, :, None, :]
    s_states = s_states_bm[:, :, None, :]
    return Xions, out_clust, s_states


# ----------------------------------------------------------------------------
# Pure-JAX reference of the batched forward path (prob = 0.0), batch-major.
# ----------------------------------------------------------------------------
def _reference_forward(initial_state, data_window, A_w, B_w, n_obs, n_ext):
    Bsz, seq = data_window.shape[0], data_window.shape[1]
    n_hid = A_w.shape[0]
    hp = lax.Precision.HIGHEST
    obs = data_window[:, :, 0, :n_obs]
    ext = data_window[:, :, 0, n_obs:]

    s = initial_state.reshape(Bsz, n_hid) + jnp.dot(ext[:, 0], B_w, precision=hp)
    states, xions, clust = [], [], []
    for t in range(seq):
        states.append(s)
        yhat = s[:, :n_obs]
        delta = yhat - obs[:, t]          # keep mask == 1 for prob = 0
        xions.append(yhat)
        clust.append(delta)
        if t < seq - 1:
            corr = jnp.pad(delta, ((0, 0), (0, n_hid - n_obs)))
            s = (jnp.dot(jnp.tanh(s - corr), A_w, precision=hp)
                 + jnp.dot(ext[:, t + 1], B_w, precision=hp))
    X = jnp.stack(xions, 1)[:, :, None, :]
    C = jnp.stack(clust, 1)[:, :, None, :]
    S = jnp.stack(states, 1)[:, :, None, :]
    return X, C, S


if __name__ == "__main__":
    # small shapes consistent with the module's batched forward path
    n_obs, n_ext, n_hid = 4, 3, 32
    batch, seq = 2, 8

    key = jax.random.PRNGKey(0)
    k_data, k_a, k_b, k_drop = jax.random.split(key, 4)

    # deterministic parameter init (shapes per ptf_cell: A: hid->hid, B: ext->hid)
    k_lim_a = 1.0 / jnp.sqrt(jnp.float32(n_hid))
    k_lim_b = 1.0 / jnp.sqrt(jnp.float32(n_ext))
    A_w = jax.random.uniform(k_a, (n_hid, n_hid), jnp.float32, -k_lim_a, k_lim_a)
    B_w = jax.random.uniform(k_b, (n_ext, n_hid), jnp.float32, -k_lim_b, k_lim_b)

    # s0_nature='zeros_' initial hidden state, batched: (B, 1, n_hid)
    initial_state = jnp.zeros((batch, 1, n_hid), jnp.float32)
    data_window = jax.random.normal(
        k_data, (batch, seq, 1, n_obs + n_ext), jnp.float32)

    # pure-JAX reference (prob = 0 => deterministic path)
    X_ref, C_ref, S_ref = _reference_forward(
        initial_state, data_window, A_w, B_w, n_obs, n_ext)

    # ---- f32 MXU path, time_chunk=4 (exercises the cross-chunk state carry) --
    X32, C32, S32 = ptf_model_climate_forward(
        initial_state, data_window, prob=0.0, A_w=A_w, B_w=B_w,
        n_obs=n_obs, n_ext=n_ext, dropout_key=k_drop,
        time_chunk=4, matmul_dtype=jnp.float32)
    jax.block_until_ready((X32, C32, S32))
    assert X32.shape == (batch, seq, 1, n_obs)
    assert C32.shape == (batch, seq, 1, n_obs)
    assert S32.shape == (batch, seq, 1, n_hid)
    assert jnp.allclose(S32, S_ref, rtol=2e-3, atol=2e-3)
    assert jnp.allclose(X32, X_ref, rtol=2e-3, atol=2e-3)
    assert jnp.allclose(C32, C_ref, rtol=2e-3, atol=2e-3)

    # ---- bf16 MXU path (perf default); rounding drift feeds back through the
    #      recurrence, so the tolerance is looser. ------------------------------
    Xions, out_clust, s_states = ptf_model_climate_forward(
        initial_state, data_window, prob=0.0, A_w=A_w, B_w=B_w,
        n_obs=n_obs, n_ext=n_ext, dropout_key=k_drop,
        time_chunk=8, matmul_dtype=jnp.bfloat16)
    jax.block_until_ready((Xions, out_clust, s_states))
    assert Xions.shape == (batch, seq, 1, n_obs)
    assert out_clust.shape == (batch, seq, 1, n_obs)
    assert s_states.shape == (batch, seq, 1, n_hid)
    assert jnp.allclose(s_states, S_ref, rtol=5e-2, atol=5e-2)
    assert jnp.allclose(Xions, X_ref, rtol=5e-2, atol=5e-2)
    assert jnp.allclose(out_clust, C_ref, rtol=5e-2, atol=5e-2)

    print("KERNEL_OK")
</pallas_src>

<mosaic_0001>
module attributes {stable_mosaic.version = 11 : i64} {
  func.func @_ptf_chunk_kernel(%arg0: i32, %arg1: i32, %arg2: memref<8x32xf32, #tpu.memory_space<vmem>>, %arg3: memref<8x128xbf16, #tpu.memory_space<vmem>>, %arg4: memref<8x128xf32, #tpu.memory_space<vmem>>, %arg5: memref<32x32xf32, #tpu.memory_space<vmem>>, %arg6: memref<8x128xf32, #tpu.memory_space<vmem>>, %arg7: memref<8x32xf32, #tpu.memory_space<vmem>>) attributes {dimension_semantics = [#tpu.dimension_semantics<parallel>, #tpu.dimension_semantics<arbitrary>], iteration_bounds = array<i64: 1, 2>, scalar_prefetch = 0 : i64, scratch_operands = 1 : i64, tpu.core_type = #tpu.core_type<tc>, window_params = [{transform_indices = @transform_0, window_bounds = array<i64: 8, 32>}, {transform_indices = @transform_1, window_bounds = array<i64: 8, 128>}, {transform_indices = @transform_2, window_bounds = array<i64: 8, 128>}, {pipeline_mode = #tpu.pipeline_mode<synchronous>, transform_indices = @transform_3, window_bounds = array<i64: 32, 32>}, {transform_indices = @transform_4, window_bounds = array<i64: 8, 128>}]} {
    %c0_i32 = arith.constant 0 : i32
    %0 = arith.cmpi eq, %arg1, %c0_i32 : i32
    %1 = arith.extui %0 : i1 to i32
    %c0_i32_0 = arith.constant 0 : i32
    %2 = arith.cmpi ne, %1, %c0_i32_0 : i32
    scf.if %2 {
      %c0_38 = arith.constant 0 : index
      %c0_39 = arith.constant 0 : index
      %46 = vector.load %arg2[%c0_38, %c0_39] : memref<8x32xf32, #tpu.memory_space<vmem>>, vector<8x32xf32>
      %c0_40 = arith.constant 0 : index
      %c0_41 = arith.constant 0 : index
      %47 = vector.load %arg7[%c0_40, %c0_41] : memref<8x32xf32, #tpu.memory_space<vmem>>, vector<8x32xf32>
      tpu.vector_store %arg7[%c0_40, %c0_41], %46 {strides = array<i32>} : memref<8x32xf32, #tpu.memory_space<vmem>>, vector<8x32xf32>,
    } else {
    }
    %c0 = arith.constant 0 : index
    %c0_1 = arith.constant 0 : index
    %3 = vector.load %arg5[%c0, %c0_1] : memref<32x32xf32, #tpu.memory_space<vmem>>, vector<32x32xf32>
    %c0_2 = arith.constant 0 : index
    %c0_3 = arith.constant 0 : index
    %4 = vector.load %arg7[%c0_2, %c0_3] : memref<8x32xf32, #tpu.memory_space<vmem>>, vector<8x32xf32>
    %c0_4 = arith.constant 0 : index
    %c0_5 = arith.constant 0 : index
    %5 = vector.load %arg6[%c0_4, %c0_5] : memref<8x128xf32, #tpu.memory_space<vmem>>, vector<8x32xf32>
    tpu.vector_store %arg6[%c0_4, %c0_5], %4 {strides = array<i32>} : memref<8x128xf32, #tpu.memory_space<vmem>>, vector<8x32xf32>,
    %c0_6 = arith.constant 0 : index
    %c0_7 = arith.constant 0 : index
    %6 = vector.load %arg3[%c0_6, %c0_7] : memref<8x128xbf16, #tpu.memory_space<vmem>>, vector<8x32xbf16>
    %c0_8 = arith.constant 0 : index
    %c0_9 = arith.constant 0 : index
    %7 = vector.load %arg4[%c0_8, %c0_9] : memref<8x128xf32, #tpu.memory_space<vmem>>, vector<8x32xf32>
    %cst = arith.constant 0.000000e+00 : bf16
    %8 = vector.broadcast %cst : bf16 to vector<8x32xbf16>
    %9 = arith.cmpf one, %6, %8 : vector<8x32xbf16>
    %10 = math.tanh %4 : vector<8x32xf32>
    %cst_10 = arith.constant 0.000000e+00 : f32
    %11 = vector.broadcast %cst_10 : f32 to vector<8x32xf32>
    %12 = arith.select %9, %11, %10 : vector<8x32xi1>, vector<8x32xf32>
    %cst_11 = arith.constant dense<0.000000e+00> : vector<8x32xf32>
    %13 = tpu.matmul %12, %3, %cst_11 {dimension_numbers = #tpu.dot_dimension_numbers<[1], [0], [0], [1], [0, 0, 1, 1], [], []>} : vector<8x32xf32>, vector<32x32xf32>, vector<8x32xf32> -> vector<8x32xf32>
    %14 = arith.addf %13, %7 : vector<8x32xf32>
    %c0_12 = arith.constant 0 : index
    %c32 = arith.constant 32 : index
    %15 = vector.load %arg6[%c0_12, %c32] : memref<8x128xf32, #tpu.memory_space<vmem>>, vector<8x32xf32>
    tpu.vector_store %arg6[%c0_12, %c32], %14 {strides = array<i32>} : memref<8x128xf32, #tpu.memory_space<vmem>>, vector<8x32xf32>,
    %c0_13 = arith.constant 0 : index
    %c32_14 = arith.constant 32 : index
    %16 = vector.load %arg3[%c0_13, %c32_14] : memref<8x128xbf16, #tpu.memory_space<vmem>>, vector<8x32xbf16>
    %c0_15 = arith.constant 0 : index
    %c32_16 = arith.constant 32 : index
    %17 = vector.load %arg4[%c0_15, %c32_16] : memref<8x128xf32, #tpu.memory_space<vmem>>, vector<8x32xf32>
    %cst_17 = arith.constant 0.000000e+00 : bf16
    %18 = vector.broadcast %cst_17 : bf16 to vector<8x32xbf16>
    %19 = arith.cmpf one, %16, %18 : vector<8x32xbf16>
    %20 = math.tanh %14 : vector<8x32xf32>
    %cst_18 = arith.constant 0.000000e+00 : f32
    %21 = vector.broadcast %cst_18 : f32 to vector<8x32xf32>
    %22 = arith.select %19, %21, %20 : vector<8x32xi1>, vector<8x32xf32>
    %cst_19 = arith.constant dense<0.000000e+00> : vector<8x32xf32>
    %23 = tpu.matmul %22, %3, %cst_19 {dimension_numbers = #tpu.dot_dimension_numbers<[1], [0], [0], [1], [0, 0, 1, 1], [], []>} : vector<8x32xf32>, vector<32x32xf32>, vector<8x32xf32> -> vector<8x32xf32>
    %24 = arith.addf %23, %17 : vector<8x32xf32>
    %c0_20 = arith.constant 0 : index
    %c64 = arith.constant 64 : index
    %25 = vector.load %arg6[%c0_20, %c64] : memref<8x128xf32, #tpu.memory_space<vmem>>, vector<8x32xf32>
    tpu.vector_store %arg6[%c0_20, %c64], %24 {strides = array<i32>} : memref<8x128xf32, #tpu.memory_space<vmem>>, vector<8x32xf32>,
    %c0_21 = arith.constant 0 : index
    %c64_22 = arith.constant 64 : index
    %26 = vector.load %arg3[%c0_21, %c64_22] : memref<8x128xbf16, #tpu.memory_space<vmem>>, vector<8x32xbf16>
    %c0_23 = arith.constant 0 : index
    %c64_24 = arith.constant 64 : index
    %27 = vector.load %arg4[%c0_23, %c64_24] : memref<8x128xf32, #tpu.memory_space<vmem>>, vector<8x32xf32>
    %cst_25 = arith.constant 0.000000e+00 : bf16
    %28 = vector.broadcast %cst_25 : bf16 to vector<8x32xbf16>
    %29 = arith.cmpf one, %26, %28 : vector<8x32xbf16>
    %30 = math.tanh %24 : vector<8x32xf32>
    %cst_26 = arith.constant 0.000000e+00 : f32
    %31 = vector.broadcast %cst_26 : f32 to vector<8x32xf32>
    %32 = arith.select %29, %31, %30 : vector<8x32xi1>, vector<8x32xf32>
    %cst_27 = arith.constant dense<0.000000e+00> : vector<8x32xf32>
    %33 = tpu.matmul %32, %3, %cst_27 {dimension_numbers = #tpu.dot_dimension_numbers<[1], [0], [0], [1], [0, 0, 1, 1], [], []>} : vector<8x32xf32>, vector<32x32xf32>, vector<8x32xf32> -> vector<8x32xf32>
    %34 = arith.addf %33, %27 : vector<8x32xf32>
    %c0_28 = arith.constant 0 : index
    %c96 = arith.constant 96 : index
    %35 = vector.load %arg6[%c0_28, %c96] : memref<8x128xf32, #tpu.memory_space<vmem>>, vector<8x32xf32>
    tpu.vector_store %arg6[%c0_28, %c96], %34 {strides = array<i32>} : memref<8x128xf32, #tpu.memory_space<vmem>>, vector<8x32xf32>,
    %c0_29 = arith.constant 0 : index
    %c96_30 = arith.constant 96 : index
    %36 = vector.load %arg3[%c0_29, %c96_30] : memref<8x128xbf16, #tpu.memory_space<vmem>>, vector<8x32xbf16>
    %c0_31 = arith.constant 0 : index
    %c96_32 = arith.constant 96 : index
    %37 = vector.load %arg4[%c0_31, %c96_32] : memref<8x128xf32, #tpu.memory_space<vmem>>, vector<8x32xf32>
    %cst_33 = arith.constant 0.000000e+00 : bf16
    %38 = vector.broadcast %cst_33 : bf16 to vector<8x32xbf16>
    %39 = arith.cmpf one, %36, %38 : vector<8x32xbf16>
    %40 = math.tanh %34 : vector<8x32xf32>
    %cst_34 = arith.constant 0.000000e+00 : f32
    %41 = vector.broadcast %cst_34 : f32 to vector<8x32xf32>
    %42 = arith.select %39, %41, %40 : vector<8x32xi1>, vector<8x32xf32>
    %cst_35 = arith.constant dense<0.000000e+00> : vector<8x32xf32>
    %43 = tpu.matmul %42, %3, %cst_35 {dimension_numbers = #tpu.dot_dimension_numbers<[1], [0], [0], [1], [0, 0, 1, 1], [], []>} : vector<8x32xf32>, vector<32x32xf32>, vector<8x32xf32> -> vector<8x32xf32>
    %44 = arith.addf %43, %37 : vector<8x32xf32>
    %c0_36 = arith.constant 0 : index
    %c0_37 = arith.constant 0 : index
    %45 = vector.load %arg7[%c0_36, %c0_37] : memref<8x32xf32, #tpu.memory_space<vmem>>, vector<8x32xf32>
    tpu.vector_store %arg7[%c0_36, %c0_37], %44 {strides = array<i32>} : memref<8x32xf32, #tpu.memory_space<vmem>>, vector<8x32xf32>,
    return
  }
  func.func @transform_0(%arg0: i32, %arg1: i32) -> (i32, i32) {
    %c0_i32 = arith.constant 0 : i32
    %c0_i32_0 = arith.constant 0 : i32
    return %arg0, %c0_i32 : i32, i32
  }
  func.func @transform_1(%arg0: i32, %arg1: i32) -> (i32, i32) {
    %c0_i32 = arith.constant 0 : i32
    return %arg0, %arg1 : i32, i32
  }
  func.func @transform_2(%arg0: i32, %arg1: i32) -> (i32, i32) {
    %c0_i32 = arith.constant 0 : i32
    return %arg0, %arg1 : i32, i32
  }
  func.func @transform_3(%arg0: i32, %arg1: i32) -> (i32, i32) {
    %c0_i32 = arith.constant 0 : i32
    %c0_i32_0 = arith.constant 0 : i32
    %c0_i32_1 = arith.constant 0 : i32
    return %c0_i32, %c0_i32_0 : i32, i32
  }
  func.func @transform_4(%arg0: i32, %arg1: i32) -> (i32, i32) {
    %c0_i32 = arith.constant 0 : i32
    return %arg0, %arg1 : i32, i32
  }
}

</mosaic_0001>

<llo_original>
// kernel: tpu_custom_call.1
$region0: #{tpu_custom_call.1}
  #allocation0 [shape = 'u32[]', space=smem, size = 0x4, offset = 0x4, fixed_abs, tag = 'smem constant byte address 0x4 - core index']
  #allocation1 [shape = 'u32[144,128]{1,0:T(1,128)}', space=vmem, size = 0x12000, scoped, tag = 'internal scratch']
  #allocation2 [shape = 'f32[8,32]{1,0:T(8,128)}', space=vmem, size = 0x1000, scoped, tag = 'scratch operand']
  %s0 = inlined_call_operand.hbm [shape: f32[8,32], index: 0, kind: input, shape index: {}]
  %s1 = inlined_call_operand.hbm [shape: bf16[8,256], index: 1, kind: input, shape index: {}]
  %s2 = inlined_call_operand.hbm [shape: f32[8,256], index: 2, kind: input, shape index: {}]
  %s3 = inlined_call_operand.hbm [shape: f32[32,32], index: 3, kind: input, shape index: {}]
  %s4 = inlined_call_operand.hbm [shape: f32[8,256], index: 4, kind: output, shape index: {}]
  %s5 = sld [smem:[#allocation0]]
  $region69: #{tpu_custom_call.1} parent=0
    _
  %s7 = ssub.s32 1, %s5
  %s8 = scalar_select 0, %s7, %s5
  $region1: #{tpu_custom_call.1} parent=0
    #allocation3 [shape = 'u8[4096]{0}', space=vmem, size = 0x1000, scoped, tag = 'input window, operand 0, single buffered']
    #allocation4 [shape = 's32[2]{0}', space=sflag, size = 0x8, scoped, tag = 'scoped memory for tpu_custom_call.1']
    #allocation5 [shape = 's32[2]{0}', space=sflag, size = 0x8, scoped, tag = 'scoped memory for tpu_custom_call.1']
    #allocation6 [shape = 'u8[4096]{0}', space=vmem, size = 0x1000, scoped, tag = 'input window, operand 1']
    #allocation7 [shape = 's32[2]{0}', space=sflag, size = 0x8, scoped, tag = 'scoped memory for tpu_custom_call.1']
    #allocation8 [shape = 'u8[8192]{0}', space=vmem, size = 0x2000, scoped, tag = 'input window, operand 2']
    #allocation9 [shape = 'u8[16384]{0}', space=vmem, size = 0x4000, scoped, tag = 'input window, operand 3, single buffered']
    #allocation10 [shape = 's32[1]{0}', space=sflag, size = 0x4, scoped, tag = 'scoped memory for tpu_custom_call.1']
    #allocation11 [shape = 'u8[8192]{0}', space=vmem, size = 0x2000, scoped, tag = 'output window, operand 0']
    %9 = vsyncpa [#allocation4], 0
    %10 = vsyncpa [#allocation7], 0
    %s11 = scalar_lea.sflag [#allocation7], 1
    %12 = vsyncpa %s11, 0
    %13 = vsyncpa [#allocation10], 0
    %14 = vsyncpa [#allocation5], 0
    %s15 = scalar_lea.sflag [#allocation5], 1
    %16 = vsyncpa %s15, 0
    loop: start=0, step=1, limit=4
    $region2: #{tpu_custom_call.1} parent=1 // loop_pre_header
      _
    $region3: #{tpu_custom_call.1} parent=1 // loop_header
      %s18 = sphi 0, %s22
      %p19 = scmp.ge.s32.totalorder %s18, 4
      %s25 = sphi 0, %s37
      %s26 = sphi 0, %s33
      %s27 = sphi 0, %s25
      %s28 = sphi 0, %s26
      %s29 = sphi 0, %s27
      %s30 = sphi 0, %s28
      %s40 = sphi 0, %s42
      %s43 = sphi 0, %s40
      %s44 = sphi 0, %s43
      %s60 = sphi 0, %s44
      %s68 = sphi 0, %s70
      %s71 = sphi 0, %s68
      %s72 = sphi 0, %s71
      %s88 = sphi 0, %s72
      %s96 = sphi 0, %s98
      %s99 = sphi 0, %s96
      %s100 = sphi 0, %s99
      %s116 = sphi 0, %s100
      %s120 = sphi 0, %s120
      %s122 = sphi 0, %s120
      %s123 = sphi 0, %s122
      %s137 = sphi 0, %s123
      %s145 = sphi 0, %s147
      %s148 = sphi 0, %s145
      %s149 = sphi 0, %s148
      %s165 = sphi 0, %s149
    $region4: #{tpu_custom_call.1} parent=1 // loop_header_branch
      %21 = sbr.rel (%p19) target = $region8
    $region5: #{tpu_custom_call.1} parent=1 // loop_body
      %s23 = ssub.s32 %s18, 1
      %s24 = ssub.s32 %s18, 2
      %s31 = sadd.s32 1, %s26
      %p32 = scmp.ge.s32.totalorder %s31, 2
      %s33 = scalar_select %p32, 0, %s31
      %s34 = sadd.s32 1, %s25
      %s35 = scalar_select %p32, %s34, %s25
      %p36 = scmp.ge.s32.totalorder %s35, 1
      %s37 = scalar_select %p36, 0, %s35
      %s38 = ssub.s32 %s25, %s37
      %p39 = scmp.eq.s32.totalorder %s38, 0
      %s41 = sadd.s32 %s40, 1
      %s42 = scalar_select %p39, %s40, %s41
      %p45 = pneg %p39
      %p46 = scmp.eq.s32.totalorder %s18, 1
      %p47 = por %p45, %p46
      %p48 = scmp.ne.s32.totalorder %s40, %s43
      %p49 = scmp.eq.s32.totalorder %s18, 0
      %p50 = por %p48, %p49
      %p51 = scmp.ne.s32.totalorder %s40, %s43
      %p52 = scmp.eq.s32.totalorder %s23, 1
      %p53 = por %p51, %p52
      %p54 = scmp.ne.s32.totalorder %s43, %s44
      %p55 = scmp.eq.s32.totalorder %s23, 0
      %p56 = por %p54, %p55
      %p57 = scmp.ne.s32.totalorder %s43, %s44
      %p58 = scmp.eq.s32.totalorder %s24, 1
      %p59 = por %p57, %p58
      %p61 = scmp.ne.s32.totalorder %s44, %s60
      %p62 = scmp.eq.s32.totalorder %s24, 0
      %p63 = por %p61, %p62
      %s64 = ssub.s32 %s25, %s37
      %s65 = ssub.s32 %s26, %s33
      %s66 = sor.u32 %s64, %s65
      %p67 = scmp.eq.s32.totalorder %s66, 0
      %s69 = sadd.s32 %s68, 1
      %s70 = scalar_select %p67, %s68, %s69
      %p73 = pneg %p67
      %p74 = scmp.eq.s32.totalorder %s18, 1
      %p75 = por %p73, %p74
      %p76 = scmp.ne.s32.totalorder %s68, %s71
      %p77 = scmp.eq.s32.totalorder %s18, 0
      %p78 = por %p76, %p77
      %p79 = scmp.ne.s32.totalorder %s68, %s71
      %p80 = scmp.eq.s32.totalorder %s23, 1
      %p81 = por %p79, %p80
      %p82 = scmp.ne.s32.totalorder %s71, %s72
      %p83 = scmp.eq.s32.totalorder %s23, 0
      %p84 = por %p82, %p83
      %p85 = scmp.ne.s32.totalorder %s71, %s72
      %p86 = scmp.eq.s32.totalorder %s24, 1
      %p87 = por %p85, %p86
      %p89 = scmp.ne.s32.totalorder %s72, %s88
      %p90 = scmp.eq.s32.totalorder %s24, 0
      %p91 = por %p89, %p90
      %s92 = ssub.s32 %s25, %s37
      %s93 = ssub.s32 %s26, %s33
      %s94 = sor.u32 %s92, %s93
      %p95 = scmp.eq.s32.totalorder %s94, 0
      %s97 = sadd.s32 %s96, 1
      %s98 = scalar_select %p95, %s96, %s97
      %p101 = pneg %p95
      %p102 = scmp.eq.s32.totalorder %s18, 1
      %p103 = por %p101, %p102
      %p104 = scmp.ne.s32.totalorder %s96, %s99
      %p105 = scmp.eq.s32.totalorder %s18, 0
      %p106 = por %p104, %p105
      %p107 = scmp.ne.s32.totalorder %s96, %s99
      %p108 = scmp.eq.s32.totalorder %s23, 1
      %p109 = por %p107, %p108
      %p110 = scmp.ne.s32.totalorder %s99, %s100
      %p111 = scmp.eq.s32.totalorder %s23, 0
      %p112 = por %p110, %p111
      %p113 = scmp.ne.s32.totalorder %s99, %s100
      %p114 = scmp.eq.s32.totalorder %s24, 1
      %p115 = por %p113, %p114
      %p117 = scmp.ne.s32.totalorder %s100, %s116
      %p118 = scmp.eq.s32.totalorder %s24, 0
      %p119 = por %p117, %p118
      %s121 = sadd.s32 %s120, 1
      %p124 = scmp.eq.s32.totalorder %s18, 1
      %p125 = scmp.ne.s32.totalorder %s120, %s122
      %p126 = scmp.eq.s32.totalorder %s18, 0
      %p127 = por %p125, %p126
      %p128 = scmp.ne.s32.totalorder %s120, %s122
      %p129 = scmp.eq.s32.totalorder %s23, 1
      %p130 = por %p128, %p129
      %p131 = scmp.ne.s32.totalorder %s122, %s123
      %p132 = scmp.eq.s32.totalorder %s23, 0
      %p133 = por %p131, %p132
      %p134 = scmp.ne.s32.totalorder %s122, %s123
      %p135 = scmp.eq.s32.totalorder %s24, 1
      %p136 = por %p134, %p135
      %p138 = scmp.ne.s32.totalorder %s123, %s137
      %p139 = scmp.eq.s32.totalorder %s24, 0
      %p140 = por %p138, %p139
      %s141 = ssub.s32 %s25, %s37
      %s142 = ssub.s32 %s26, %s33
      %s143 = sor.u32 %s141, %s142
      %p144 = scmp.eq.s32.totalorder %s143, 0
      %s146 = sadd.s32 %s145, 1
      %s147 = scalar_select %p144, %s145, %s146
      %p150 = pneg %p144
      %p151 = scmp.eq.s32.totalorder %s18, 1
      %p152 = por %p150, %p151
      %p153 = scmp.ne.s32.totalorder %s145, %s148
      %p154 = scmp.eq.s32.totalorder %s18, 0
      %p155 = por %p153, %p154
      %p156 = scmp.ne.s32.totalorder %s145, %s148
      %p157 = scmp.eq.s32.totalorder %s23, 1
      %p158 = por %p156, %p157
      %p159 = scmp.ne.s32.totalorder %s148, %s149
      %p160 = scmp.eq.s32.totalorder %s23, 0
      %p161 = por %p159, %p160
      %p162 = scmp.ne.s32.totalorder %s148, %s149
      %p163 = scmp.eq.s32.totalorder %s24, 1
      %p164 = por %p162, %p163
      %p166 = scmp.ne.s32.totalorder %s149, %s165
      %p167 = scmp.eq.s32.totalorder %s24, 0
      %p168 = por %p166, %p167
      %p169 = scmp.le.s32.totalorder 1, %s18
      %p170 = scmp.lt.s32.totalorder %s18, 3
      %p171 = pnand %p169, %p170
      %p172 = pneg %p171
      // Predicated region
      $region9: #{tpu_custom_call.1} parent=5 // pred_check
        _
      $region10: #{tpu_custom_call.1} parent=5 // pred_check_branch
        %174 = sbr.rel (%p171) target = $region12
      $region11: #{tpu_custom_call.1} parent=5 // pred_region
        %s175 = ssub.s32 %s18, 1
        // Predicated region
        $region13: #{tpu_custom_call.1} parent=11 // pred_check
          %p176 = pneg %p56
        $region14: #{tpu_custom_call.1} parent=11 // pred_check_branch
          %178 = sbr.rel (%p176) target = $region16
        $region15: #{tpu_custom_call.1} parent=11 // pred_region
          %s180 = ssub.s32 128, 128
          %181 = vsyncadd [#allocation4], %s180
          %s182 = smul.addr %s27, 128
          %s183 = scalar_lea.hbm %s0, %s182
          %s185 = sshll.u32 [#allocation3], 4
          %s186 = int_to_ptr.vmem [resolvable:$true] %s185
          %188 = dma.hbm_to_vmem [thread:$0]  %s183, 128, %s186, [#allocation4]
        $region16: #{tpu_custom_call.1} parent=11 // pred_fallthru
          _
        // Predicated region
        $region17: #{tpu_custom_call.1} parent=11 // pred_check
          %p189 = pneg %p133
        $region18: #{tpu_custom_call.1} parent=11 // pred_check_branch
          %191 = sbr.rel (%p189) target = $region20
        $region19: #{tpu_custom_call.1} parent=11 // pred_region
          %s193 = ssub.s32 512, 512
          %194 = vsyncadd [#allocation10], %s193
          %s195 = sshll.u32 [#allocation9], 4
          %s196 = int_to_ptr.vmem [resolvable:$true] %s195
          %201 = dma.hbm_to_vmem [thread:$0]  %s3, 512, %s196, [#allocation10], 128, 128, 8
        $region20: #{tpu_custom_call.1} parent=11 // pred_fallthru
          _
      $region12: #{tpu_custom_call.1} parent=5 // pred_fallthru
        _
      %p202 = scmp.lt.s32.totalorder %s18, 2
      // Predicated region
      $region21: #{tpu_custom_call.1} parent=5 // pred_check
        %p203 = pneg %p202
      $region22: #{tpu_custom_call.1} parent=5 // pred_check_branch
        %205 = sbr.rel (%p203) target = $region24
      $region23: #{tpu_custom_call.1} parent=5 // pred_region
        // Predicated region
        $region25: #{tpu_custom_call.1} parent=23 // pred_check
          %p206 = pneg %p78
        $region26: #{tpu_custom_call.1} parent=23 // pred_check_branch
          %208 = sbr.rel (%p206) target = $region28
        $region27: #{tpu_custom_call.1} parent=23 // pred_region
          %s209 = sand.u32 %s18, 1
          %s210 = scalar_lea.sflag [#allocation7], %s209
          %s211 = sand.u32 %s68, 1
          %s212 = smul.addr %s211, 4
          %s213 = scalar_lea.vmem [#allocation6], %s212
          %s215 = ssub.s32 64, 64
          %216 = vsyncadd %s210, %s215
          %s217 = smul.addr %s25, 2
          %s218 = sadd.s32 %s26, %s217
          %s219 = smul.addr %s218, 64
          %s220 = scalar_lea.hbm %s1, %s219
          %s222 = sshll.u32 %s213, 4
          %s223 = int_to_ptr.vmem [resolvable:$true] %s222
          %225 = dma.hbm_to_vmem [thread:$0]  %s220, 64, %s223, %s210
        $region28: #{tpu_custom_call.1} parent=23 // pred_fallthru
          _
        // Predicated region
        $region29: #{tpu_custom_call.1} parent=23 // pred_check
          %p226 = pneg %p106
        $region30: #{tpu_custom_call.1} parent=23 // pred_check_branch
          %228 = sbr.rel (%p226) target = $region32
        $region31: #{tpu_custom_call.1} parent=23 // pred_region
          %s229 = sand.u32 %s18, 1
          %s230 = scalar_lea.sflag [#allocation7], %s229
          %s231 = sand.u32 %s96, 1
          %s232 = smul.addr %s231, 8
          %s233 = scalar_lea.vmem [#allocation8], %s232
          %s235 = ssub.s32 128, 128
          %236 = vsyncadd %s230, %s235
          %s237 = smul.addr %s25, 2
          %s238 = sadd.s32 %s26, %s237
          %s239 = smul.addr %s238, 128
          %s240 = scalar_lea.hbm %s2, %s239
          %s242 = sshll.u32 %s233, 4
          %s243 = int_to_ptr.vmem [resolvable:$true] %s242
          %245 = dma.hbm_to_vmem [thread:$0]  %s240, 128, %s243, %s230
        $region32: #{tpu_custom_call.1} parent=23 // pred_fallthru
          _
      $region24: #{tpu_custom_call.1} parent=5 // pred_fallthru
        _
      %p246 = scmp.le.s32.totalorder 1, %s18
      %p247 = scmp.lt.s32.totalorder %s18, 3
      %p248 = pnand %p246, %p247
      %p249 = pneg %p248
      // Predicated region
      $region33: #{tpu_custom_call.1} parent=5 // pred_check
        _
      $region34: #{tpu_custom_call.1} parent=5 // pred_check_branch
        %251 = sbr.rel (%p248) target = $region36
      $region35: #{tpu_custom_call.1} parent=5 // pred_region
        %s252 = ssub.s32 %s18, 1
        // Predicated region
        $region37: #{tpu_custom_call.1} parent=35 // pred_check
          %p253 = pneg %p56
        $region38: #{tpu_custom_call.1} parent=35 // pred_check_branch
          %255 = sbr.rel (%p253) target = $region40
        $region39: #{tpu_custom_call.1} parent=35 // pred_region
          %256 = dma.done [#allocation4], 128
        $region40: #{tpu_custom_call.1} parent=35 // pred_fallthru
          _
        %s257 = sand.u32 %s23, 1
        %s258 = scalar_lea.sflag [#allocation7], %s257
        %s259 = sand.u32 %s71, 1
        %s260 = smul.addr %s259, 4
        %s261 = scalar_lea.vmem [#allocation6], %s260
        // Predicated region
        $region41: #{tpu_custom_call.1} parent=35 // pred_check
          %p262 = pneg %p84
        $region42: #{tpu_custom_call.1} parent=35 // pred_check_branch
          %264 = sbr.rel (%p262) target = $region44
        $region43: #{tpu_custom_call.1} parent=35 // pred_region
          %265 = dma.done %s258, 64
        $region44: #{tpu_custom_call.1} parent=35 // pred_fallthru
          _
        %s266 = sand.u32 %s23, 1
        %s267 = scalar_lea.sflag [#allocation7], %s266
        %s268 = sand.u32 %s99, 1
        %s269 = smul.addr %s268, 8
        %s270 = scalar_lea.vmem [#allocation8], %s269
        // Predicated region
        $region45: #{tpu_custom_call.1} parent=35 // pred_check
          %p271 = pneg %p112
        $region46: #{tpu_custom_call.1} parent=35 // pred_check_branch
          %273 = sbr.rel (%p271) target = $region48
        $region47: #{tpu_custom_call.1} parent=35 // pred_region
          %274 = dma.done %s267, 128
        $region48: #{tpu_custom_call.1} parent=35 // pred_fallthru
          _
        // Predicated region
        $region49: #{tpu_custom_call.1} parent=35 // pred_check
          %p275 = pneg %p133
        $region50: #{tpu_custom_call.1} parent=35 // pred_check_branch
          %277 = sbr.rel (%p275) target = $region52
        $region51: #{tpu_custom_call.1} parent=35 // pred_region
          %278 = dma.done [#allocation10], 512
        $region52: #{tpu_custom_call.1} parent=35 // pred_fallthru
          _
        %p279 = pneg %p56
        %p280 = pneg %p53
        %s281 = sand.u32 %s23, 1
        %s282 = scalar_lea.sflag [#allocation7], %s281
        %s283 = sand.u32 %s71, 1
        %s284 = smul.addr %s283, 4
        %s285 = scalar_lea.vmem [#allocation6], %s284
        %p286 = pneg %p84
        %p287 = pneg %p81
        %s288 = sand.u32 %s23, 1
        %s289 = scalar_lea.sflag [#allocation7], %s288
        %s290 = sand.u32 %s99, 1
        %s291 = smul.addr %s290, 8
        %s292 = scalar_lea.vmem [#allocation8], %s291
        %p293 = pneg %p112
        %p294 = pneg %p109
        %p295 = pneg %p133
        %p296 = pneg %p130
        %p297 = pneg %p161
        %p298 = pneg %p158
        %s299 = sand.u32 %s148, 1
        %s300 = scalar_lea.sflag [#allocation5], %s299
        %s301 = sand.u32 %s148, 1
        %s302 = smul.addr %s301, 8
        %s303 = scalar_lea.vmem [#allocation11], %s302
        %p307 = scmp.eq.s32.totalorder %s28, 0
        // Predicated region
        $region53: #{tpu_custom_call.1} parent=35 // pred_check
          %p308 = pneg %p307
        $region54: #{tpu_custom_call.1} parent=35 // pred_check_branch
          %310 = sbr.rel (%p308) target = $region56
        $region55: #{tpu_custom_call.1} parent=35 // pred_region
          %v311 = vld [vmem:[#allocation3] sm:$0xff]
          %vm312 = vcmask 261120
          %313 = vst.msk [vmem:[#allocation2] sm:$0xff] %vm312, %v311
        $region56: #{tpu_custom_call.1} parent=35 // pred_fallthru
          _
        %v314 = vld [vmem:[#allocation9] sm:$0xff]
        %v315 = vld [vmem:[#allocation9 + $0x8] sm:$0xff]
        %v316 = vld [vmem:[#allocation9 + $0x10] sm:$0xff]
        %v317 = vld [vmem:[#allocation9 + $0x18] sm:$0xff]
        %v318 = vld [vmem:[#allocation2] sm:$0xff]
        %vm319 = vcmask 261120
        %320 = vst.msk [vmem:[%s303] sm:$0xff] %vm319, %v318
        %v321 = vld [vmem:[%s261] sm:$0xf]
        %v322 = vld [vmem:[%s270] sm:$0xff]
        %vm323 = vcmp.ne.bf16.partialorder %v321, 0
        %v324 = vtanh.pop %v318
        %v325 = vsel %vm323, 65537, 0
        %v326 = vunpack.c.l.b16 %v325
        %vm327 = vcmp.ne.s32.totalorder %v326, 0
        %v328 = vsel %vm327, 0.0, %v324
        %v330 = vsel %vm319, %v328, 0
        %332 = vmatprep.subr.mxu0 0.0
        %333 = vmatpush1.msra.mxu0 0.0
        %334 = vmatprep.subr.mxu0 0.0
        %335 = vmatpush1.msra.mxu0 0.0
        %336 = vmatprep.subr.mxu0 0.0
        %337 = vmatpush1.msra.mxu0 0.0
        %338 = vmatprep.subr.mxu0 0.0
        %339 = vmatpush1.msra.mxu0 0.0
        %340 = vmatprep.subr.mxu0 0.0
        %341 = vmatpush1.msra.mxu0 0.0
        %342 = vmatprep.subr.mxu0 0.0
        %343 = vmatpush1.msra.mxu0 0.0
        %344 = vmatprep.subr.mxu0 0.0
        %345 = vmatpush1.msra.mxu0 0.0
        %346 = vmatprep.subr.mxu0 0.0
        %347 = vmatpush1.msra.mxu0 0.0
        %348 = vmatprep.subr.mxu0 0.0
        %349 = vmatpush1.msra.mxu0 0.0
        %350 = vmatprep.subr.mxu0 0.0
        %351 = vmatpush1.msra.mxu0 0.0
        %352 = vmatprep.subr.mxu0 0.0
        %353 = vmatpush1.msra.mxu0 0.0
        %354 = vmatprep.subr.mxu0 0.0
        %355 = vmatpush1.msra.mxu0 0.0
        %356 = vmatprep.subr.mxu0 0.0
        %357 = vmatpush1.msra.mxu0 %v317
        %358 = vmatprep.subr.mxu0 0.0
        %359 = vmatpush1.msra.mxu0 %v316
        %360 = vmatprep.subr.mxu0 0.0
        %361 = vmatpush1.msra.mxu0 %v315
        %362 = vmatprep.subr.mxu0 0.0
        %363 = vmatpush1.msra.mxu0 %v314
        %364 = vmatprep.subr.mxu0 0.0
        %365 = vmatpush2.msra.mxu0 0.0
        %366 = vmatprep.subr.mxu0 0.0
        %367 = vmatpush2.msra.mxu0 0.0
        %368 = vmatprep.subr.mxu0 0.0
        %369 = vmatpush2.msra.mxu0 0.0
        %370 = vmatprep.subr.mxu0 0.0
        %371 = vmatpush2.msra.mxu0 0.0
        %372 = vmatprep.subr.mxu0 0.0
        %373 = vmatpush2.msra.mxu0 0.0
        %374 = vmatprep.subr.mxu0 0.0
        %375 = vmatpush2.msra.mxu0 0.0
        %376 = vmatprep.subr.mxu0 0.0
        %377 = vmatpush2.msra.mxu0 0.0
        %378 = vmatprep.subr.mxu0 0.0
        %379 = vmatpush2.msra.mxu0 0.0
        %380 = vmatprep.subr.mxu0 0.0
        %381 = vmatpush2.msra.mxu0 0.0
        %382 = vmatprep.subr.mxu0 0.0
        %383 = vmatpush2.msra.mxu0 0.0
        %384 = vmatprep.subr.mxu0 0.0
        %385 = vmatpush2.msra.mxu0 0.0
        %386 = vmatprep.subr.mxu0 0.0
        %387 = vmatpush2.msra.mxu0 0.0
        %388 = vmatprep.subr.mxu0 0.0
        %389 = vmatpush2.msra.mxu0 0.0
        %390 = vmatprep.subr.mxu0 0.0
        %391 = vmatpush2.msra.mxu0 0.0
        %392 = vmatprep.subr.mxu0 0.0
        %393 = vmatpush2.msra.mxu0 0.0
        %394 = vmatprep.subr.mxu0 0.0
        %395 = vmatpush2.msra.mxu0 0.0
        %396 = vmatprep.mubr.f32.mxu0 0.0
        %397 = vmatmul.mubr.f32.gmra.mxu0 %v330
        %v398 = vpop.f32.mrf.mxu0
        %v399 = vadd.f32 %v322, %v398
        %v400 = vpop.f32.mrf.mxu0
        %401 = vdwg.mxu0
        %403 = vrot.lane.b32.xlu0 %v399, 32
        %v404 = vpop.permute.xlu0 %403
        %vm406 = vcmask 523520
        %407 = vst.msk [vmem:[%s303] sm:$0xff] %vm406, %v404
        %v408 = vld [vmem:[%s261] sm:$0xf]
        %v409 = vld [vmem:[%s270] sm:$0xff]
        %vm410 = vcmp.ne.bf16.partialorder %v408, 0
        %v411 = vtanh.pop %v399
        %v412 = vsel %vm410, 65537, 0
        %v413 = vunpack.c.l.b16 %v412
        %vm414 = vcmp.ne.s32.totalorder %v413, 0
        %v415 = vsel %vm414, 1, 0
        %416 = vrot.lane.b32.xlu0 %v415, 96
        %v417 = vpop.permute.xlu0 %416
        %vm418 = vcmp.ne.s32.totalorder %v417, 0
        %v419 = vsel %vm418, 0.0, %v411
        %421 = vrot.lane.b32.xlu0 %v409, 96
        %v422 = vpop.permute.xlu0 %421
        %v425 = vsel %vm319, %v419, 0
        %427 = vmatprep.subr.mxu0 0.0
        %428 = vmatpush1.msra.mxu0 0.0
        %429 = vmatprep.subr.mxu0 0.0
        %430 = vmatpush1.msra.mxu0 0.0
        %431 = vmatprep.subr.mxu0 0.0
        %432 = vmatpush1.msra.mxu0 0.0
        %433 = vmatprep.subr.mxu0 0.0
        %434 = vmatpush1.msra.mxu0 0.0
        %435 = vmatprep.subr.mxu0 0.0
        %436 = vmatpush1.msra.mxu0 0.0
        %437 = vmatprep.subr.mxu0 0.0
        %438 = vmatpush1.msra.mxu0 0.0
        %439 = vmatprep.subr.mxu0 0.0
        %440 = vmatpush1.msra.mxu0 0.0
        %441 = vmatprep.subr.mxu0 0.0
        %442 = vmatpush1.msra.mxu0 0.0
        %443 = vmatprep.subr.mxu0 0.0
        %444 = vmatpush1.msra.mxu0 0.0
        %445 = vmatprep.subr.mxu0 0.0
        %446 = vmatpush1.msra.mxu0 0.0
        %447 = vmatprep.subr.mxu0 0.0
        %448 = vmatpush1.msra.mxu0 0.0
        %449 = vmatprep.subr.mxu0 0.0
        %450 = vmatpush1.msra.mxu0 0.0
        %451 = vmatprep.subr.mxu0 0.0
        %452 = vmatpush1.msra.mxu0 %v317
        %453 = vmatprep.subr.mxu0 0.0
        %454 = vmatpush1.msra.mxu0 %v316
        %455 = vmatprep.subr.mxu0 0.0
        %456 = vmatpush1.msra.mxu0 %v315
        %457 = vmatprep.subr.mxu0 0.0
        %458 = vmatpush1.msra.mxu0 %v314
        %459 = vmatprep.subr.mxu0 0.0
        %460 = vmatpush2.msra.mxu0 0.0
        %461 = vmatprep.subr.mxu0 0.0
        %462 = vmatpush2.msra.mxu0 0.0
        %463 = vmatprep.subr.mxu0 0.0
        %464 = vmatpush2.msra.mxu0 0.0
        %465 = vmatprep.subr.mxu0 0.0
        %466 = vmatpush2.msra.mxu0 0.0
        %467 = vmatprep.subr.mxu0 0.0
        %468 = vmatpush2.msra.mxu0 0.0
        %469 = vmatprep.subr.mxu0 0.0
        %470 = vmatpush2.msra.mxu0 0.0
        %471 = vmatprep.subr.mxu0 0.0
        %472 = vmatpush2.msra.mxu0 0.0
        %473 = vmatprep.subr.mxu0 0.0
        %474 = vmatpush2.msra.mxu0 0.0
        %475 = vmatprep.subr.mxu0 0.0
        %476 = vmatpush2.msra.mxu0 0.0
        %477 = vmatprep.subr.mxu0 0.0
        %478 = vmatpush2.msra.mxu0 0.0
        %479 = vmatprep.subr.mxu0 0.0
        %480 = vmatpush2.msra.mxu0 0.0
        %481 = vmatprep.subr.mxu0 0.0
        %482 = vmatpush2.msra.mxu0 0.0
        %483 = vmatprep.subr.mxu0 0.0
        %484 = vmatpush2.msra.mxu0 0.0
        %485 = vmatprep.subr.mxu0 0.0
        %486 = vmatpush2.msra.mxu0 0.0
        %487 = vmatprep.subr.mxu0 0.0
        %488 = vmatpush2.msra.mxu0 0.0
        %489 = vmatprep.subr.mxu0 0.0
        %490 = vmatpush2.msra.mxu0 0.0
        %491 = vmatprep.mubr.f32.mxu0 0.0
        %492 = vmatmul.mubr.f32.gmra.mxu0 %v425
        %v493 = vpop.f32.mrf.mxu0
        %v494 = vadd.f32 %v422, %v493
        %v495 = vpop.f32.mrf.mxu0
        %496 = vdwg.mxu0
        %498 = vrot.lane.b32.xlu0 %v494, 64
        %v499 = vpop.permute.xlu0 %498
        %vm501 = vcmask 785920
        %502 = vst.msk [vmem:[%s303] sm:$0xff] %vm501, %v499
        %v503 = vld [vmem:[%s261] sm:$0xf]
        %v504 = vld [vmem:[%s270] sm:$0xff]
        %vm505 = vcmp.ne.bf16.partialorder %v503, 0
        %v506 = vtanh.pop %v494
        %v507 = vsel %vm505, 65537, 0
        %v508 = vunpack.c.l.b16 %v507
        %vm509 = vcmp.ne.s32.totalorder %v508, 0
        %v510 = vsel %vm509, 1, 0
        %511 = vrot.lane.b32.xlu0 %v510, 64
        %v512 = vpop.permute.xlu0 %511
        %vm513 = vcmp.ne.s32.totalorder %v512, 0
        %v514 = vsel %vm513, 0.0, %v506
        %516 = vrot.lane.b32.xlu0 %v504, 64
        %v517 = vpop.permute.xlu0 %516
        %v520 = vsel %vm319, %v514, 0
        %522 = vmatprep.subr.mxu0 0.0
        %523 = vmatpush1.msra.mxu0 0.0
        %524 = vmatprep.subr.mxu0 0.0
        %525 = vmatpush1.msra.mxu0 0.0
        %526 = vmatprep.subr.mxu0 0.0
        %527 = vmatpush1.msra.mxu0 0.0
        %528 = vmatprep.subr.mxu0 0.0
        %529 = vmatpush1.msra.mxu0 0.0
        %530 = vmatprep.subr.mxu0 0.0
        %531 = vmatpush1.msra.mxu0 0.0
        %532 = vmatprep.subr.mxu0 0.0
        %533 = vmatpush1.msra.mxu0 0.0
        %534 = vmatprep.subr.mxu0 0.0
        %535 = vmatpush1.msra.mxu0 0.0
        %536 = vmatprep.subr.mxu0 0.0
        %537 = vmatpush1.msra.mxu0 0.0
        %538 = vmatprep.subr.mxu0 0.0
        %539 = vmatpush1.msra.mxu0 0.0
        %540 = vmatprep.subr.mxu0 0.0
        %541 = vmatpush1.msra.mxu0 0.0
        %542 = vmatprep.subr.mxu0 0.0
        %543 = vmatpush1.msra.mxu0 0.0
        %544 = vmatprep.subr.mxu0 0.0
        %545 = vmatpush1.msra.mxu0 0.0
        %546 = vmatprep.subr.mxu0 0.0
        %547 = vmatpush1.msra.mxu0 %v317
        %548 = vmatprep.subr.mxu0 0.0
        %549 = vmatpush1.msra.mxu0 %v316
        %550 = vmatprep.subr.mxu0 0.0
        %551 = vmatpush1.msra.mxu0 %v315
        %552 = vmatprep.subr.mxu0 0.0
        %553 = vmatpush1.msra.mxu0 %v314
        %554 = vmatprep.subr.mxu0 0.0
        %555 = vmatpush2.msra.mxu0 0.0
        %556 = vmatprep.subr.mxu0 0.0
        %557 = vmatpush2.msra.mxu0 0.0
        %558 = vmatprep.subr.mxu0 0.0
        %559 = vmatpush2.msra.mxu0 0.0
        %560 = vmatprep.subr.mxu0 0.0
        %561 = vmatpush2.msra.mxu0 0.0
        %562 = vmatprep.subr.mxu0 0.0
        %563 = vmatpush2.msra.mxu0 0.0
        %564 = vmatprep.subr.mxu0 0.0
        %565 = vmatpush2.msra.mxu0 0.0
        %566 = vmatprep.subr.mxu0 0.0
        %567 = vmatpush2.msra.mxu0 0.0
        %568 = vmatprep.subr.mxu0 0.0
        %569 = vmatpush2.msra.mxu0 0.0
        %570 = vmatprep.subr.mxu0 0.0
        %571 = vmatpush2.msra.mxu0 0.0
        %572 = vmatprep.subr.mxu0 0.0
        %573 = vmatpush2.msra.mxu0 0.0
        %574 = vmatprep.subr.mxu0 0.0
        %575 = vmatpush2.msra.mxu0 0.0
        %576 = vmatprep.subr.mxu0 0.0
        %577 = vmatpush2.msra.mxu0 0.0
        %578 = vmatprep.subr.mxu0 0.0
        %579 = vmatpush2.msra.mxu0 0.0
        %580 = vmatprep.subr.mxu0 0.0
        %581 = vmatpush2.msra.mxu0 0.0
        %582 = vmatprep.subr.mxu0 0.0
        %583 = vmatpush2.msra.mxu0 0.0
        %584 = vmatprep.subr.mxu0 0.0
        %585 = vmatpush2.msra.mxu0 0.0
        %586 = vmatprep.mubr.f32.mxu0 0.0
        %587 = vmatmul.mubr.f32.gmra.mxu0 %v520
        %v588 = vpop.f32.mrf.mxu0
        %v589 = vadd.f32 %v517, %v588
        %v590 = vpop.f32.mrf.mxu0
        %591 = vdwg.mxu0
        %593 = vrot.lane.b32.xlu0 %v589, 96
        %v594 = vpop.permute.xlu0 %593
        %vm596 = vcmask 1048320
        %597 = vst.msk [vmem:[%s303] sm:$0xff] %vm596, %v594
        %v598 = vld [vmem:[%s261] sm:$0xf]
        %v599 = vld [vmem:[%s270] sm:$0xff]
        %vm600 = vcmp.ne.bf16.partialorder %v598, 0
        %v601 = vtanh.pop %v589
        %v602 = vsel %vm600, 65537, 0
        %v603 = vunpack.c.l.b16 %v602
        %vm604 = vcmp.ne.s32.totalorder %v603, 0
        %v605 = vsel %vm604, 1, 0
        %606 = vrot.lane.b32.xlu0 %v605, 32
        %v607 = vpop.permute.xlu0 %606
        %vm608 = vcmp.ne.s32.totalorder %v607, 0
        %v609 = vsel %vm608, 0.0, %v601
        %611 = vrot.lane.b32.xlu0 %v599, 32
        %v612 = vpop.permute.xlu0 %611
        %v615 = vsel %vm319, %v609, 0
        %617 = vmatprep.subr.mxu0 0.0
        %618 = vmatpush1.msra.mxu0 0.0
        %619 = vmatprep.subr.mxu0 0.0
        %620 = vmatpush1.msra.mxu0 0.0
        %621 = vmatprep.subr.mxu0 0.0
        %622 = vmatpush1.msra.mxu0 0.0
        %623 = vmatprep.subr.mxu0 0.0
        %624 = vmatpush1.msra.mxu0 0.0
        %625 = vmatprep.subr.mxu0 0.0
        %626 = vmatpush1.msra.mxu0 0.0
        %627 = vmatprep.subr.mxu0 0.0
        %628 = vmatpush1.msra.mxu0 0.0
        %629 = vmatprep.subr.mxu0 0.0
        %630 = vmatpush1.msra.mxu0 0.0
        %631 = vmatprep.subr.mxu0 0.0
        %632 = vmatpush1.msra.mxu0 0.0
        %633 = vmatprep.subr.mxu0 0.0
        %634 = vmatpush1.msra.mxu0 0.0
        %635 = vmatprep.subr.mxu0 0.0
        %636 = vmatpush1.msra.mxu0 0.0
        %637 = vmatprep.subr.mxu0 0.0
        %638 = vmatpush1.msra.mxu0 0.0
        %639 = vmatprep.subr.mxu0 0.0
        %640 = vmatpush1.msra.mxu0 0.0
        %641 = vmatprep.subr.mxu0 0.0
        %642 = vmatpush1.msra.mxu0 %v317
        %643 = vmatprep.subr.mxu0 0.0
        %644 = vmatpush1.msra.mxu0 %v316
        %645 = vmatprep.subr.mxu0 0.0
        %646 = vmatpush1.msra.mxu0 %v315
        %647 = vmatprep.subr.mxu0 0.0
        %648 = vmatpush1.msra.mxu0 %v314
        %649 = vmatprep.subr.mxu0 0.0
        %650 = vmatpush2.msra.mxu0 0.0
        %651 = vmatprep.subr.mxu0 0.0
        %652 = vmatpush2.msra.mxu0 0.0
        %653 = vmatprep.subr.mxu0 0.0
        %654 = vmatpush2.msra.mxu0 0.0
        %655 = vmatprep.subr.mxu0 0.0
        %656 = vmatpush2.msra.mxu0 0.0
        %657 = vmatprep.subr.mxu0 0.0
        %658 = vmatpush2.msra.mxu0 0.0
        %659 = vmatprep.subr.mxu0 0.0
        %660 = vmatpush2.msra.mxu0 0.0
        %661 = vmatprep.subr.mxu0 0.0
        %662 = vmatpush2.msra.mxu0 0.0
        %663 = vmatprep.subr.mxu0 0.0
        %664 = vmatpush2.msra.mxu0 0.0
        %665 = vmatprep.subr.mxu0 0.0
        %666 = vmatpush2.msra.mxu0 0.0
        %667 = vmatprep.subr.mxu0 0.0
        %668 = vmatpush2.msra.mxu0 0.0
        %669 = vmatprep.subr.mxu0 0.0
        %670 = vmatpush2.msra.mxu0 0.0
        %671 = vmatprep.subr.mxu0 0.0
        %672 = vmatpush2.msra.mxu0 0.0
        %673 = vmatprep.subr.mxu0 0.0
        %674 = vmatpush2.msra.mxu0 0.0
        %675 = vmatprep.subr.mxu0 0.0
        %676 = vmatpush2.msra.mxu0 0.0
        %677 = vmatprep.subr.mxu0 0.0
        %678 = vmatpush2.msra.mxu0 0.0
        %679 = vmatprep.subr.mxu0 0.0
        %680 = vmatpush2.msra.mxu0 0.0
        %681 = vmatprep.mubr.f32.mxu0 0.0
        %682 = vmatmul.mubr.f32.gmra.mxu0 %v615
        %v683 = vpop.f32.mrf.mxu0
        %v684 = vadd.f32 %v612, %v683
        %v685 = vpop.f32.mrf.mxu0
        %686 = vdwg.mxu0
        %687 = vst.msk [vmem:[#allocation2] sm:$0xff] %vm319, %v684
        %s688 = sand.u32 %s148, 1
        %s689 = scalar_lea.sflag [#allocation5], %s688
        %s690 = sand.u32 %s148, 1
        %s691 = smul.addr %s690, 8
        %s692 = scalar_lea.vmem [#allocation11], %s691
        // Predicated region
        $region57: #{tpu_custom_call.1} parent=35 // pred_check
          %p693 = pneg %p158
        $region58: #{tpu_custom_call.1} parent=35 // pred_check_branch
          %695 = sbr.rel (%p693) target = $region60
        $region59: #{tpu_custom_call.1} parent=35 // pred_region
          %s697 = ssub.s32 128, 128
          %698 = vsyncadd %s689, %s697
          %s699 = smul.addr %s27, 2
          %s700 = sadd.s32 %s28, %s699
          %s701 = smul.addr %s700, 128
          %s702 = scalar_lea.hbm %s4, %s701
          %s704 = sshll.u32 %s692, 4
          %s705 = int_to_ptr.vmem [resolvable:$true] %s704
          %707 = dma.vmem_to_hbm [thread:$0]  %s705, 128, %s702, %s689
        $region60: #{tpu_custom_call.1} parent=35 // pred_fallthru
          _
      $region36: #{tpu_custom_call.1} parent=5 // pred_fallthru
        _
      %p708 = scmp.le.s32.totalorder 2, %s18
      // Predicated region
      $region61: #{tpu_custom_call.1} parent=5 // pred_check
        %p709 = pneg %p708
      $region62: #{tpu_custom_call.1} parent=5 // pred_check_branch
        %711 = sbr.rel (%p709) target = $region64
      $region63: #{tpu_custom_call.1} parent=5 // pred_region
        %s712 = ssub.s32 %s18, 2
        // Predicated region
        $region65: #{tpu_custom_call.1} parent=63 // pred_check
          %p713 = pneg %p164
        $region66: #{tpu_custom_call.1} parent=63 // pred_check_branch
          %715 = sbr.rel (%p713) target = $region68
        $region67: #{tpu_custom_call.1} parent=63 // pred_region
          %s716 = sand.u32 %s149, 1
          %s717 = scalar_lea.sflag [#allocation5], %s716
          %s718 = sand.u32 %s149, 1
          %s719 = smul.addr %s718, 8
          %s720 = scalar_lea.vmem [#allocation11], %s719
          %721 = dma.done %s717, 128
        $region68: #{tpu_custom_call.1} parent=63 // pred_fallthru
          _
      $region64: #{tpu_custom_call.1} parent=5 // pred_fallthru
        _
    $region6: #{tpu_custom_call.1} parent=1 // loop_footer
      %s22 = sadd.s32 1, %s18
    $region7: #{tpu_custom_call.1} parent=1 // loop_footer_branch
      %17 = sbr.rel target = $region3
    $region8: #{tpu_custom_call.1} parent=1 // loop_exit
      _
    %722 = vsyncpa [#allocation4], 1
    %s723 = scalar_lea.sflag [#allocation4], 1
    %724 = vsyncpa %s723, 1
    %725 = vsyncpa [#allocation7], 1
    %s726 = scalar_lea.sflag [#allocation7], 1
    %727 = vsyncpa %s726, 1
    %728 = vsyncpa [#allocation10], 1
    %729 = vsyncpa [#allocation5], 1
    %s730 = scalar_lea.sflag [#allocation5], 1
    %731 = vsyncpa %s730, 1

</llo_original>
